<compile_context>
chip_gen: v7x
topology: tpu7x:2x2x1
jax: 0.10.0
libtpu: 0.0.40
codegen_flags: <defaults>
</compile_context>

<pallas_src>
import math
import numpy as np
import jax
import jax.numpy as jnp
from jax.experimental import pallas as pl
from jax.experimental.pallas import tpu as pltpu

# ---------------- model config (small, consistent with the module) ----------------
BATCH = 2
SEQ = 8
HIDDEN = 32
NUM_HEADS = 4
HEAD_DIM = HIDDEN // NUM_HEADS
FF_EXPANSION = 4
FF_DIM = HIDDEN * FF_EXPANSION
LN_EPS = 1e-5

# Set to jnp.bfloat16 on v6e/v7x for native-rate MXU operands at real sizes (biggest single
# matmul lever per the perf review); keep f32 here so the f32 reference check stays tight.
MATMUL_DTYPE = jnp.float32
# True -> tanh GELU on the EUP slot (cheaper); slight deviation from torch's exact GELU.
USE_TANH_GELU = False


def _layernorm(x, gamma, beta):
    # x: (rows, H); gamma/beta: (1, H). Biased variance, like torch.nn.LayerNorm. f32 math.
    mean = jnp.mean(x, axis=-1, keepdims=True)
    var = jnp.mean((x - mean) ** 2, axis=-1, keepdims=True)
    inv = jax.lax.rsqrt(var + LN_EPS)
    return (x - mean) * inv * gamma + beta


def _gelu(x):
    if USE_TANH_GELU:
        return jax.nn.gelu(x, approximate=True)
    # torch default nn.GELU() (exact erf form)
    return 0.5 * x * (1.0 + jax.lax.erf(x * (1.0 / math.sqrt(2.0))))


def transformer_block_kernel(
    x_ref,
    wqkv_ref, bqkv_ref, wo_ref, bo_ref,
    ln1g_ref, ln1b_ref,
    w1_ref, b1_ref, w2_ref, b2_ref,
    ln2g_ref, ln2b_ref,
    head_mask_ref, batch_bias_ref,
    o_ref,
):
    BS, H = x_ref.shape          # (B*S, H): all rows processed in one step
    NH = NUM_HEADS

    x2 = x_ref[...]              # single contiguous (BS, H) load

    # ---- fused QKV projection (softmax scale pre-folded into Wq/bq wrapper-side) ----
    qkv = jnp.dot(x2.astype(MATMUL_DTYPE), wqkv_ref[...],
                  preferred_element_type=jnp.float32) + bqkv_ref[...]
    q = qkv[:, :H]               # already scaled by 1/sqrt(head_dim)
    k = qkv[:, H:2 * H]
    v = qkv[:, 2 * H:]

    # ---- head-batched attention via block-diagonal masking ----
    # q replicated per head along the sublane axis; non-own-head lanes zeroed so that a
    # single (R, H) x (H, BS) MXU matmul yields every (batch, head) score block at once.
    head_mask = head_mask_ref[...]                        # (R, H) static {0,1} f32 constant
    q_rep = jnp.concatenate([q] * NH, axis=0)             # (R, H), rows ordered (head, batch, seq)
    q_bd = q_rep * head_mask

    scores = jax.lax.dot_general(                          # (R, BS): NT contraction, no transpose
        q_bd.astype(MATMUL_DTYPE), k.astype(MATMUL_DTYPE),
        (((1,), (1,)), ((), ())), preferred_element_type=jnp.float32)
    # forbid cross-batch attention: precomputed additive bias (finite floor, not -inf)
    scores = scores + batch_bias_ref[...]
    # TODO(synk): user-provided attention mask (mask != None) path not implemented.

    m = jnp.max(scores, axis=-1, keepdims=True)
    e = jnp.exp(scores - m)
    # exact divide: pl.reciprocal(approx=True) here (bf16-level) broke the reference check
    attn = e / jnp.sum(e, axis=-1, keepdims=True)

    # context for all heads in one matmul; keep only own-head lanes, then fold heads back
    # with sublane-aligned slice adds (do NOT replace with reshape(...).sum(0): relayout).
    ctx_full = jnp.dot(attn.astype(MATMUL_DTYPE), v.astype(MATMUL_DTYPE),
                       preferred_element_type=jnp.float32)           # (R, H)
    ctx_full = ctx_full * head_mask
    ctx = ctx_full[0:BS]
    for h in range(1, NH):
        ctx = ctx + ctx_full[h * BS:(h + 1) * BS]                     # (BS, H)

    attn_out = jnp.dot(ctx.astype(MATMUL_DTYPE), wo_ref[...],
                       preferred_element_type=jnp.float32) + bo_ref[...]

    # ---- residual + layernorm 1 (f32 elementwise) ----
    h1 = _layernorm(x2 + attn_out, ln1g_ref[...], ln1b_ref[...])      # (BS, H)

    # ---- feed-forward ----
    ff = jnp.dot(h1.astype(MATMUL_DTYPE), w1_ref[...],
                 preferred_element_type=jnp.float32) + b1_ref[...]     # (BS, FF)
    ff = _gelu(ff)
    ff = jnp.dot(ff.astype(MATMUL_DTYPE), w2_ref[...],
                 preferred_element_type=jnp.float32) + b2_ref[...]     # (BS, H)

    # ---- residual + layernorm 2; single contiguous store ----
    out = _layernorm(h1 + ff, ln2g_ref[...], ln2b_ref[...])
    o_ref[...] = out.astype(o_ref.dtype)


def _build_static_masks():
    """Static {0,1} head mask (R, H) and cross-batch additive bias (R, BS); ~12 KiB total."""
    BS = BATCH * SEQ
    R = NUM_HEADS * BS
    rows = np.arange(R)
    head_of_row = rows // BS                                  # which head owns row r
    head_of_feat = np.arange(HIDDEN) // HEAD_DIM              # which head owns feature f
    head_mask = (head_of_row[:, None] == head_of_feat[None, :]).astype(np.float32)
    batch_of_row = (rows // SEQ) % BATCH
    batch_of_col = np.arange(BS) // SEQ
    batch_bias = np.where(batch_of_row[:, None] == batch_of_col[None, :],
                          0.0, -1e30).astype(np.float32)
    return jnp.asarray(head_mask), jnp.asarray(batch_bias)


def transformer_block(x, params):
    (wq, bq, wk, bk, wv, bv, wo, bo,
     ln1g, ln1b, w1, b1, w2, b2, ln2g, ln2b) = params
    B, S, H = x.shape

    # Fuse QKV and fold the 1/sqrt(head_dim) softmax scale into the Q projection
    # (weight AND bias -- keep them in sync if the fusion is edited).
    scale = 1.0 / math.sqrt(HEAD_DIM)
    wqkv = jnp.concatenate([wq * scale, wk, wv], axis=1)      # (H, 3H)
    bqkv = jnp.concatenate([bq * scale, bk, bv], axis=1)      # (1, 3H)

    head_mask, batch_bias = _build_static_masks()

    # Wrapper-side reshape is a free row-major view; removes in-kernel gather/scatter.
    x2 = x.reshape(B * S, H)

    inputs = (x2,
              wqkv.astype(MATMUL_DTYPE), bqkv,
              wo.astype(MATMUL_DTYPE), bo,
              ln1g, ln1b,
              w1.astype(MATMUL_DTYPE), b1,
              w2.astype(MATMUL_DTYPE), b2,
              ln2g, ln2b,
              head_mask, batch_bias)

    vmem = lambda: pl.BlockSpec(memory_space=pltpu.MemorySpace.VMEM)
    out2 = pl.pallas_call(
        transformer_block_kernel,
        out_shape=jax.ShapeDtypeStruct((B * S, H), x.dtype),
        in_specs=[vmem() for _ in inputs],
        out_specs=vmem(),
        # Single grid step on purpose: 16 rows is launch-overhead bound. When B*S scales
        # past ~256 rows, switch to a row-tiled grid with
        # dimension_semantics=("parallel",) (mandatory to use v7x's second TensorCore)
        # and re-derive tiles for v7x's 64 MiB VMEM.
    )(*inputs)
    return out2.reshape(B, S, H)


# ---------------- deterministic parameter initialization ----------------
def init_params(key):
    keys = jax.random.split(key, 6)

    def lin(k, fan_in, fan_out):
        # weight stored as (in, out) so kernel computes x @ W + b
        w = jax.random.normal(k, (fan_in, fan_out), jnp.float32) * (1.0 / math.sqrt(fan_in))
        b = jnp.zeros((1, fan_out), jnp.float32)
        return w, b

    wq, bq = lin(keys[0], HIDDEN, HIDDEN)
    wk, bk = lin(keys[1], HIDDEN, HIDDEN)
    wv, bv = lin(keys[2], HIDDEN, HIDDEN)
    wo, bo = lin(keys[3], HIDDEN, HIDDEN)
    w1, b1 = lin(keys[4], HIDDEN, FF_DIM)
    w2, b2 = lin(keys[5], FF_DIM, HIDDEN)
    ln1g = jnp.ones((1, HIDDEN), jnp.float32)
    ln1b = jnp.zeros((1, HIDDEN), jnp.float32)
    ln2g = jnp.ones((1, HIDDEN), jnp.float32)
    ln2b = jnp.zeros((1, HIDDEN), jnp.float32)
    return [wq, bq, wk, bk, wv, bv, wo, bo, ln1g, ln1b, w1, b1, w2, b2, ln2g, ln2b]


# ---------------- pure-JAX reference (torch-equivalent, f32-accurate) ----------------
def reference(x, params):
    (wq, bq, wk, bk, wv, bv, wo, bo, ln1g, ln1b, w1, b1, w2, b2, ln2g, ln2b) = params
    B, S, H = x.shape
    hp = jax.lax.Precision.HIGHEST   # avoid bf16-pass f32 matmuls in the reference on TPU

    def ln(v, g, b_):
        mu = jnp.mean(v, -1, keepdims=True)
        var = jnp.mean((v - mu) ** 2, -1, keepdims=True)
        return (v - mu) / jnp.sqrt(var + LN_EPS) * g + b_

    def lin(v, w, b_):
        return jnp.dot(v, w, precision=hp) + b_

    q = lin(x, wq, bq).reshape(B, S, NUM_HEADS, HEAD_DIM).transpose(0, 2, 1, 3)
    k = lin(x, wk, bk).reshape(B, S, NUM_HEADS, HEAD_DIM).transpose(0, 2, 1, 3)
    v = lin(x, wv, bv).reshape(B, S, NUM_HEADS, HEAD_DIM).transpose(0, 2, 1, 3)
    scores = jnp.einsum("bhqd,bhkd->bhqk", q, k, precision=hp) / math.sqrt(HEAD_DIM)
    attn = jax.nn.softmax(scores, axis=-1)
    ctx = jnp.einsum("bhqk,bhkd->bhqd", attn, v,
                     precision=hp).transpose(0, 2, 1, 3).reshape(B, S, H)
    attn_out = lin(ctx, wo, bo)
    h1 = ln(x + attn_out, ln1g, ln1b)
    ff = lin(jax.nn.gelu(lin(h1, w1, b1), approximate=False), w2, b2)
    return ln(h1 + ff, ln2g, ln2b)


if __name__ == "__main__":
    key = jax.random.PRNGKey(0)
    kx, kp = jax.random.split(key)
    x = jax.random.normal(kx, (BATCH, SEQ, HIDDEN), jnp.float32)
    params = init_params(kp)

    out = jax.block_until_ready(transformer_block(x, params))
    ref = reference(x, params)

    assert out.shape == (BATCH, SEQ, HIDDEN)
    max_err = float(jnp.max(jnp.abs(out - ref)))
    # f32 matmuls + exact softmax divide -> error is ~1e-5; 2e-3 leaves cross-backend margin
    assert jnp.allclose(out, ref, atol=2e-3, rtol=2e-3), \
        f"mismatch vs pure-JAX reference (max abs err {max_err:.3e})"
    print("KERNEL_OK")
</pallas_src>

<mosaic_0001>
module attributes {stable_mosaic.version = 11 : i64} {
  func.func @transformer_block_kernel(%arg0: memref<16x32xf32, #tpu.memory_space<vmem>>, %arg1: memref<32x96xf32, #tpu.memory_space<vmem>>, %arg2: memref<1x96xf32, #tpu.memory_space<vmem>>, %arg3: memref<32x32xf32, #tpu.memory_space<vmem>>, %arg4: memref<1x32xf32, #tpu.memory_space<vmem>>, %arg5: memref<1x32xf32, #tpu.memory_space<vmem>>, %arg6: memref<1x32xf32, #tpu.memory_space<vmem>>, %arg7: memref<32x128xf32, #tpu.memory_space<vmem>>, %arg8: memref<1x128xf32, #tpu.memory_space<vmem>>, %arg9: memref<128x32xf32, #tpu.memory_space<vmem>>, %arg10: memref<1x32xf32, #tpu.memory_space<vmem>>, %arg11: memref<1x32xf32, #tpu.memory_space<vmem>>, %arg12: memref<1x32xf32, #tpu.memory_space<vmem>>, %arg13: memref<64x32xf32, #tpu.memory_space<vmem>>, %arg14: memref<64x16xf32, #tpu.memory_space<vmem>>, %arg15: memref<16x32xf32, #tpu.memory_space<vmem>>) attributes {dimension_semantics = [], scalar_prefetch = 0 : i64, scratch_operands = 0 : i64, tpu.core_type = #tpu.core_type<tc>} {
    %c0 = arith.constant 0 : index
    %c0_0 = arith.constant 0 : index
    %0 = vector.load %arg0[%c0, %c0_0] : memref<16x32xf32, #tpu.memory_space<vmem>>, vector<16x32xf32>
    %c0_1 = arith.constant 0 : index
    %c0_2 = arith.constant 0 : index
    %1 = vector.load %arg1[%c0_1, %c0_2] : memref<32x96xf32, #tpu.memory_space<vmem>>, vector<32x96xf32>
    %cst = arith.constant dense<0.000000e+00> : vector<16x96xf32>
    %2 = tpu.matmul %0, %1, %cst {dimension_numbers = #tpu.dot_dimension_numbers<[1], [0], [0], [1], [0, 0, 1, 1], [], []>} : vector<16x32xf32>, vector<32x96xf32>, vector<16x96xf32> -> vector<16x96xf32>
    %c0_3 = arith.constant 0 : index
    %c0_4 = arith.constant 0 : index
    %3 = vector.load %arg2[%c0_3, %c0_4] : memref<1x96xf32, #tpu.memory_space<vmem>>, vector<1x96xf32>
    %4 = vector.broadcast %3 : vector<1x96xf32> to vector<16x96xf32>
    %5 = arith.addf %2, %4 : vector<16x96xf32>
    %6 = vector.extract_strided_slice %5 {offsets = [0, 0], sizes = [16, 32], strides = [1, 1]} : vector<16x96xf32> to vector<16x32xf32>
    %7 = vector.extract_strided_slice %5 {offsets = [0, 32], sizes = [16, 32], strides = [1, 1]} : vector<16x96xf32> to vector<16x32xf32>
    %8 = vector.extract_strided_slice %5 {offsets = [0, 64], sizes = [16, 32], strides = [1, 1]} : vector<16x96xf32> to vector<16x32xf32>
    %c0_5 = arith.constant 0 : index
    %c0_6 = arith.constant 0 : index
    %9 = vector.load %arg13[%c0_5, %c0_6] : memref<64x32xf32, #tpu.memory_space<vmem>>, vector<64x32xf32>
    %10 = tpu.concatenate %6, %6, %6, %6 in 0 : vector<16x32xf32>, vector<16x32xf32>, vector<16x32xf32>, vector<16x32xf32> -> vector<64x32xf32>
    %11 = arith.mulf %10, %9 : vector<64x32xf32>
    %cst_7 = arith.constant dense<0.000000e+00> : vector<64x16xf32>
    %12 = tpu.matmul %11, %7, %cst_7 {dimension_numbers = #tpu.dot_dimension_numbers<[1], [1], [0], [0], [0, 0, 1, 0], [], []>} : vector<64x32xf32>, vector<16x32xf32>, vector<64x16xf32> -> vector<64x16xf32>
    %c0_8 = arith.constant 0 : index
    %c0_9 = arith.constant 0 : index
    %13 = vector.load %arg14[%c0_8, %c0_9] : memref<64x16xf32, #tpu.memory_space<vmem>>, vector<64x16xf32>
    %14 = arith.addf %12, %13 : vector<64x16xf32>
    %cst_10 = arith.constant dense<0xFF800000> : vector<64xf32>
    %15 = vector.multi_reduction <maximumf>, %14, %cst_10 [1] : vector<64x16xf32> to vector<64xf32>
    %16 = vector.shape_cast %15 : vector<64xf32> to vector<64x1xf32>
    %17 = vector.broadcast %16 : vector<64x1xf32> to vector<64x16xf32>
    %18 = arith.subf %14, %17 : vector<64x16xf32>
    %19 = math.exp %18 : vector<64x16xf32>
    %cst_11 = arith.constant dense<0.000000e+00> : vector<64xf32>
    %20 = vector.multi_reduction <add>, %19, %cst_11 [1] : vector<64x16xf32> to vector<64xf32>
    %21 = vector.shape_cast %20 : vector<64xf32> to vector<64x1xf32>
    %22 = vector.broadcast %21 : vector<64x1xf32> to vector<64x16xf32>
    %23 = arith.divf %19, %22 : vector<64x16xf32>
    %cst_12 = arith.constant dense<0.000000e+00> : vector<64x32xf32>
    %24 = tpu.matmul %23, %8, %cst_12 {dimension_numbers = #tpu.dot_dimension_numbers<[1], [0], [0], [1], [0, 0, 1, 1], [], []>} : vector<64x16xf32>, vector<16x32xf32>, vector<64x32xf32> -> vector<64x32xf32>
    %25 = arith.mulf %24, %9 : vector<64x32xf32>
    %26 = vector.extract_strided_slice %25 {offsets = [0, 0], sizes = [16, 32], strides = [1, 1]} : vector<64x32xf32> to vector<16x32xf32>
    %27 = vector.extract_strided_slice %25 {offsets = [16, 0], sizes = [16, 32], strides = [1, 1]} : vector<64x32xf32> to vector<16x32xf32>
    %28 = arith.addf %26, %27 : vector<16x32xf32>
    %29 = vector.extract_strided_slice %25 {offsets = [32, 0], sizes = [16, 32], strides = [1, 1]} : vector<64x32xf32> to vector<16x32xf32>
    %30 = arith.addf %28, %29 : vector<16x32xf32>
    %31 = vector.extract_strided_slice %25 {offsets = [48, 0], sizes = [16, 32], strides = [1, 1]} : vector<64x32xf32> to vector<16x32xf32>
    %32 = arith.addf %30, %31 : vector<16x32xf32>
    %c0_13 = arith.constant 0 : index
    %c0_14 = arith.constant 0 : index
    %33 = vector.load %arg3[%c0_13, %c0_14] : memref<32x32xf32, #tpu.memory_space<vmem>>, vector<32x32xf32>
    %cst_15 = arith.constant dense<0.000000e+00> : vector<16x32xf32>
    %34 = tpu.matmul %32, %33, %cst_15 {dimension_numbers = #tpu.dot_dimension_numbers<[1], [0], [0], [1], [0, 0, 1, 1], [], []>} : vector<16x32xf32>, vector<32x32xf32>, vector<16x32xf32> -> vector<16x32xf32>
    %c0_16 = arith.constant 0 : index
    %c0_17 = arith.constant 0 : index
    %35 = vector.load %arg4[%c0_16, %c0_17] : memref<1x32xf32, #tpu.memory_space<vmem>>, vector<1x32xf32>
    %36 = vector.broadcast %35 : vector<1x32xf32> to vector<16x32xf32>
    %37 = arith.addf %34, %36 : vector<16x32xf32>
    %38 = arith.addf %0, %37 : vector<16x32xf32>
    %c0_18 = arith.constant 0 : index
    %c0_19 = arith.constant 0 : index
    %39 = vector.load %arg5[%c0_18, %c0_19] : memref<1x32xf32, #tpu.memory_space<vmem>>, vector<1x32xf32>
    %c0_20 = arith.constant 0 : index
    %c0_21 = arith.constant 0 : index
    %40 = vector.load %arg6[%c0_20, %c0_21] : memref<1x32xf32, #tpu.memory_space<vmem>>, vector<1x32xf32>
    %cst_22 = arith.constant dense<0.000000e+00> : vector<16xf32>
    %41 = vector.multi_reduction <add>, %38, %cst_22 [1] : vector<16x32xf32> to vector<16xf32>
    %42 = vector.shape_cast %41 : vector<16xf32> to vector<16x1xf32>
    %cst_23 = arith.constant 3.200000e+01 : f32
    %43 = vector.broadcast %cst_23 : f32 to vector<16x1xf32>
    %44 = arith.divf %42, %43 : vector<16x1xf32>
    %45 = vector.broadcast %44 : vector<16x1xf32> to vector<16x32xf32>
    %46 = arith.subf %38, %45 : vector<16x32xf32>
    %47 = arith.mulf %46, %46 : vector<16x32xf32>
    %cst_24 = arith.constant dense<0.000000e+00> : vector<16xf32>
    %48 = vector.multi_reduction <add>, %47, %cst_24 [1] : vector<16x32xf32> to vector<16xf32>
    %49 = vector.shape_cast %48 : vector<16xf32> to vector<16x1xf32>
    %cst_25 = arith.constant 3.200000e+01 : f32
    %50 = vector.broadcast %cst_25 : f32 to vector<16x1xf32>
    %51 = arith.divf %49, %50 : vector<16x1xf32>
    %cst_26 = arith.constant 9.99999974E-6 : f32
    %52 = vector.broadcast %cst_26 : f32 to vector<16x1xf32>
    %53 = arith.addf %51, %52 : vector<16x1xf32>
    %54 = math.rsqrt %53 : vector<16x1xf32>
    %55 = vector.broadcast %44 : vector<16x1xf32> to vector<16x32xf32>
    %56 = arith.subf %38, %55 : vector<16x32xf32>
    %57 = vector.broadcast %54 : vector<16x1xf32> to vector<16x32xf32>
    %58 = arith.mulf %56, %57 : vector<16x32xf32>
    %59 = vector.broadcast %39 : vector<1x32xf32> to vector<16x32xf32>
    %60 = arith.mulf %58, %59 : vector<16x32xf32>
    %61 = vector.broadcast %40 : vector<1x32xf32> to vector<16x32xf32>
    %62 = arith.addf %60, %61 : vector<16x32xf32>
    %c0_27 = arith.constant 0 : index
    %c0_28 = arith.constant 0 : index
    %63 = vector.load %arg7[%c0_27, %c0_28] : memref<32x128xf32, #tpu.memory_space<vmem>>, vector<32x128xf32>
    %cst_29 = arith.constant dense<0.000000e+00> : vector<16x128xf32>
    %64 = tpu.matmul %62, %63, %cst_29 {dimension_numbers = #tpu.dot_dimension_numbers<[1], [0], [0], [1], [0, 0, 1, 1], [], []>} : vector<16x32xf32>, vector<32x128xf32>, vector<16x128xf32> -> vector<16x128xf32>
    %c0_30 = arith.constant 0 : index
    %c0_31 = arith.constant 0 : index
    %65 = vector.load %arg8[%c0_30, %c0_31] : memref<1x128xf32, #tpu.memory_space<vmem>>, vector<1x128xf32>
    %66 = vector.broadcast %65 : vector<1x128xf32> to vector<16x128xf32>
    %67 = arith.addf %64, %66 : vector<16x128xf32>
    %cst_32 = arith.constant 5.000000e-01 : f32
    %68 = vector.broadcast %cst_32 : f32 to vector<16x128xf32>
    %69 = arith.mulf %68, %67 : vector<16x128xf32>
    %cst_33 = arith.constant 0.707106769 : f32
    %70 = vector.broadcast %cst_33 : f32 to vector<16x128xf32>
    %71 = arith.mulf %67, %70 : vector<16x128xf32>
    %72 = math.erf %71 : vector<16x128xf32>
    %cst_34 = arith.constant 1.000000e+00 : f32
    %73 = vector.broadcast %cst_34 : f32 to vector<16x128xf32>
    %74 = arith.addf %73, %72 : vector<16x128xf32>
    %75 = arith.mulf %69, %74 : vector<16x128xf32>
    %c0_35 = arith.constant 0 : index
    %c0_36 = arith.constant 0 : index
    %76 = vector.load %arg9[%c0_35, %c0_36] : memref<128x32xf32, #tpu.memory_space<vmem>>, vector<128x32xf32>
    %cst_37 = arith.constant dense<0.000000e+00> : vector<16x32xf32>
    %77 = tpu.matmul %75, %76, %cst_37 {dimension_numbers = #tpu.dot_dimension_numbers<[1], [0], [0], [1], [0, 0, 1, 1], [], []>} : vector<16x128xf32>, vector<128x32xf32>, vector<16x32xf32> -> vector<16x32xf32>
    %c0_38 = arith.constant 0 : index
    %c0_39 = arith.constant 0 : index
    %78 = vector.load %arg10[%c0_38, %c0_39] : memref<1x32xf32, #tpu.memory_space<vmem>>, vector<1x32xf32>
    %79 = vector.broadcast %78 : vector<1x32xf32> to vector<16x32xf32>
    %80 = arith.addf %77, %79 : vector<16x32xf32>
    %81 = arith.addf %62, %80 : vector<16x32xf32>
    %c0_40 = arith.constant 0 : index
    %c0_41 = arith.constant 0 : index
    %82 = vector.load %arg11[%c0_40, %c0_41] : memref<1x32xf32, #tpu.memory_space<vmem>>, vector<1x32xf32>
    %c0_42 = arith.constant 0 : index
    %c0_43 = arith.constant 0 : index
    %83 = vector.load %arg12[%c0_42, %c0_43] : memref<1x32xf32, #tpu.memory_space<vmem>>, vector<1x32xf32>
    %cst_44 = arith.constant dense<0.000000e+00> : vector<16xf32>
    %84 = vector.multi_reduction <add>, %81, %cst_44 [1] : vector<16x32xf32> to vector<16xf32>
    %85 = vector.shape_cast %84 : vector<16xf32> to vector<16x1xf32>
    %cst_45 = arith.constant 3.200000e+01 : f32
    %86 = vector.broadcast %cst_45 : f32 to vector<16x1xf32>
    %87 = arith.divf %85, %86 : vector<16x1xf32>
    %88 = vector.broadcast %87 : vector<16x1xf32> to vector<16x32xf32>
    %89 = arith.subf %81, %88 : vector<16x32xf32>
    %90 = arith.mulf %89, %89 : vector<16x32xf32>
    %cst_46 = arith.constant dense<0.000000e+00> : vector<16xf32>
    %91 = vector.multi_reduction <add>, %90, %cst_46 [1] : vector<16x32xf32> to vector<16xf32>
    %92 = vector.shape_cast %91 : vector<16xf32> to vector<16x1xf32>
    %cst_47 = arith.constant 3.200000e+01 : f32
    %93 = vector.broadcast %cst_47 : f32 to vector<16x1xf32>
    %94 = arith.divf %92, %93 : vector<16x1xf32>
    %cst_48 = arith.constant 9.99999974E-6 : f32
    %95 = vector.broadcast %cst_48 : f32 to vector<16x1xf32>
    %96 = arith.addf %94, %95 : vector<16x1xf32>
    %97 = math.rsqrt %96 : vector<16x1xf32>
    %98 = vector.broadcast %87 : vector<16x1xf32> to vector<16x32xf32>
    %99 = arith.subf %81, %98 : vector<16x32xf32>
    %100 = vector.broadcast %97 : vector<16x1xf32> to vector<16x32xf32>
    %101 = arith.mulf %99, %100 : vector<16x32xf32>
    %102 = vector.broadcast %82 : vector<1x32xf32> to vector<16x32xf32>
    %103 = arith.mulf %101, %102 : vector<16x32xf32>
    %104 = vector.broadcast %83 : vector<1x32xf32> to vector<16x32xf32>
    %105 = arith.addf %103, %104 : vector<16x32xf32>
    %c0_49 = arith.constant 0 : index
    %c0_50 = arith.constant 0 : index
    %106 = vector.load %arg15[%c0_49, %c0_50] : memref<16x32xf32, #tpu.memory_space<vmem>>, vector<16x32xf32>
    tpu.vector_store %arg15[%c0_49, %c0_50], %105 {strides = array<i32>} : memref<16x32xf32, #tpu.memory_space<vmem>>, vector<16x32xf32>,
    return
  }
}

</mosaic_0001>

<llo_original>
// kernel: tpu_custom_call.1
$region0: #{tpu_custom_call.1}
  #allocation0 [shape = 'u32[]', space=smem, size = 0x4, offset = 0x4, fixed_abs, tag = 'smem constant byte address 0x4 - core index']
  #allocation1 [shape = 'u32[144,128]{1,0:T(1,128)}', space=vmem, size = 0x12000, scoped, tag = 'internal scratch']
  %s0 = inlined_call_operand.vmem [shape: f32[16,32], index: 0, kind: input, shape index: {}]
  %s1 = inlined_call_operand.vmem [shape: f32[32,96], index: 1, kind: input, shape index: {}]
  %s2 = inlined_call_operand.vmem [shape: f32[1,96], index: 2, kind: input, shape index: {}]
  %s3 = inlined_call_operand.vmem [shape: f32[32,32], index: 3, kind: input, shape index: {}]
  %s4 = inlined_call_operand.vmem [shape: f32[1,32], index: 4, kind: input, shape index: {}]
  %s5 = inlined_call_operand.vmem [shape: f32[1,32], index: 5, kind: input, shape index: {}]
  %s6 = inlined_call_operand.vmem [shape: f32[1,32], index: 6, kind: input, shape index: {}]
  %s7 = inlined_call_operand.vmem [shape: f32[32,128], index: 7, kind: input, shape index: {}]
  %s8 = inlined_call_operand.vmem [shape: f32[1,128], index: 8, kind: input, shape index: {}]
  %s9 = inlined_call_operand.vmem [shape: f32[128,32], index: 9, kind: input, shape index: {}]
  %s10 = inlined_call_operand.vmem [shape: f32[1,32], index: 10, kind: input, shape index: {}]
  %s11 = inlined_call_operand.vmem [shape: f32[1,32], index: 11, kind: input, shape index: {}]
  %s12 = inlined_call_operand.vmem [shape: f32[1,32], index: 12, kind: input, shape index: {}]
  %s13 = inlined_call_operand.vmem [shape: f32[64,32], index: 13, kind: input, shape index: {}]
  %s14 = inlined_call_operand.vmem [shape: f32[64,16], index: 14, kind: input, shape index: {}]
  %s15 = inlined_call_operand.hbm [shape: f32[16,32], index: 15, kind: output, shape index: {}]
  %s16 = sld [smem:[#allocation0]]
  $region70: #{tpu_custom_call.1} parent=0
    _
  %s18 = ssub.s32 1, %s16
  %s19 = scalar_select 0, %s18, %s16
  $region1: #{tpu_custom_call.1} parent=0
    #allocation2 [shape = 'u8[8192]{0}', space=vmem, size = 0x2000, scoped, tag = 'output window, operand 0, single buffered']
    #allocation3 [shape = 's32[1]{0}', space=sflag, size = 0x4, scoped, tag = 'scoped memory for tpu_custom_call.1']
    %20 = vsyncpa [#allocation3], 0
    // Predicated region
    $region2: #{tpu_custom_call.1} parent=1 // pred_check
      _
    $region3: #{tpu_custom_call.1} parent=1 // pred_check_branch
      %22 = sbr.rel (0) target = $region5
    $region4: #{tpu_custom_call.1} parent=1 // pred_region
      _
    $region5: #{tpu_custom_call.1} parent=1 // pred_fallthru
      _
    // Predicated region
    $region6: #{tpu_custom_call.1} parent=1 // pred_check
      _
    $region7: #{tpu_custom_call.1} parent=1 // pred_check_branch
      %24 = sbr.rel (0) target = $region9
    $region8: #{tpu_custom_call.1} parent=1 // pred_region
      _
    $region9: #{tpu_custom_call.1} parent=1 // pred_fallthru
      _
    // Predicated region
    $region10: #{tpu_custom_call.1} parent=1 // pred_check
      _
    $region11: #{tpu_custom_call.1} parent=1 // pred_check_branch
      %26 = sbr.rel (0) target = $region13
    $region12: #{tpu_custom_call.1} parent=1 // pred_region
      _
    $region13: #{tpu_custom_call.1} parent=1 // pred_fallthru
      _
    // Predicated region
    $region14: #{tpu_custom_call.1} parent=1 // pred_check
      _
    $region15: #{tpu_custom_call.1} parent=1 // pred_check_branch
      %28 = sbr.rel (0) target = $region17
    $region16: #{tpu_custom_call.1} parent=1 // pred_region
      _
    $region17: #{tpu_custom_call.1} parent=1 // pred_fallthru
      _
    // Predicated region
    $region18: #{tpu_custom_call.1} parent=1 // pred_check
      _
    $region19: #{tpu_custom_call.1} parent=1 // pred_check_branch
      %30 = sbr.rel (0) target = $region21
    $region20: #{tpu_custom_call.1} parent=1 // pred_region
      _
    $region21: #{tpu_custom_call.1} parent=1 // pred_fallthru
      _
    // Predicated region
    $region22: #{tpu_custom_call.1} parent=1 // pred_check
      _
    $region23: #{tpu_custom_call.1} parent=1 // pred_check_branch
      %32 = sbr.rel (0) target = $region25
    $region24: #{tpu_custom_call.1} parent=1 // pred_region
      _
    $region25: #{tpu_custom_call.1} parent=1 // pred_fallthru
      _
    // Predicated region
    $region26: #{tpu_custom_call.1} parent=1 // pred_check
      _
    $region27: #{tpu_custom_call.1} parent=1 // pred_check_branch
      %34 = sbr.rel (0) target = $region29
    $region28: #{tpu_custom_call.1} parent=1 // pred_region
      _
    $region29: #{tpu_custom_call.1} parent=1 // pred_fallthru
      _
    // Predicated region
    $region30: #{tpu_custom_call.1} parent=1 // pred_check
      _
    $region31: #{tpu_custom_call.1} parent=1 // pred_check_branch
      %36 = sbr.rel (0) target = $region33
    $region32: #{tpu_custom_call.1} parent=1 // pred_region
      _
    $region33: #{tpu_custom_call.1} parent=1 // pred_fallthru
      _
    // Predicated region
    $region34: #{tpu_custom_call.1} parent=1 // pred_check
      _
    $region35: #{tpu_custom_call.1} parent=1 // pred_check_branch
      %38 = sbr.rel (0) target = $region37
    $region36: #{tpu_custom_call.1} parent=1 // pred_region
      _
    $region37: #{tpu_custom_call.1} parent=1 // pred_fallthru
      _
    // Predicated region
    $region38: #{tpu_custom_call.1} parent=1 // pred_check
      _
    $region39: #{tpu_custom_call.1} parent=1 // pred_check_branch
      %40 = sbr.rel (0) target = $region41
    $region40: #{tpu_custom_call.1} parent=1 // pred_region
      _
    $region41: #{tpu_custom_call.1} parent=1 // pred_fallthru
      _
    // Predicated region
    $region42: #{tpu_custom_call.1} parent=1 // pred_check
      _
    $region43: #{tpu_custom_call.1} parent=1 // pred_check_branch
      %42 = sbr.rel (0) target = $region45
    $region44: #{tpu_custom_call.1} parent=1 // pred_region
      _
    $region45: #{tpu_custom_call.1} parent=1 // pred_fallthru
      _
    // Predicated region
    $region46: #{tpu_custom_call.1} parent=1 // pred_check
      _
    $region47: #{tpu_custom_call.1} parent=1 // pred_check_branch
      %44 = sbr.rel (0) target = $region49
    $region48: #{tpu_custom_call.1} parent=1 // pred_region
      _
    $region49: #{tpu_custom_call.1} parent=1 // pred_fallthru
      _
    // Predicated region
    $region50: #{tpu_custom_call.1} parent=1 // pred_check
      _
    $region51: #{tpu_custom_call.1} parent=1 // pred_check_branch
      %46 = sbr.rel (0) target = $region53
    $region52: #{tpu_custom_call.1} parent=1 // pred_region
      _
    $region53: #{tpu_custom_call.1} parent=1 // pred_fallthru
      _
    // Predicated region
    $region54: #{tpu_custom_call.1} parent=1 // pred_check
      _
    $region55: #{tpu_custom_call.1} parent=1 // pred_check_branch
      %48 = sbr.rel (0) target = $region57
    $region56: #{tpu_custom_call.1} parent=1 // pred_region
      _
    $region57: #{tpu_custom_call.1} parent=1 // pred_fallthru
      _
    // Predicated region
    $region58: #{tpu_custom_call.1} parent=1 // pred_check
      _
    $region59: #{tpu_custom_call.1} parent=1 // pred_check_branch
      %50 = sbr.rel (0) target = $region61
    $region60: #{tpu_custom_call.1} parent=1 // pred_region
      _
    $region61: #{tpu_custom_call.1} parent=1 // pred_fallthru
      _
    %v51 = vld [vmem:[%s0] sm:$0xff]
    %v52 = vld [vmem:[%s0 + $0x8] sm:$0xff]
    %v53 = vld [vmem:[%s1] sm:$0xff]
    %v54 = vld [vmem:[%s1 + $0x8] sm:$0xff]
    %v55 = vld [vmem:[%s1 + $0x10] sm:$0xff]
    %v56 = vld [vmem:[%s1 + $0x18] sm:$0xff]
    %v57 = vld [vmem:[%s2] sm:$0x1]
    %v59 = vlaneseq
    %v60 = vshrl.u32 %v59, 7
    %v61 = vsub.s32 0, %v60
    %v62 = vrot.slane %v57, %v61
    %vm64 = vcmask 261120
    %v66 = vsel %vm64, %v51, 0
    %v69 = vsel %vm64, %v52, 0
    %71 = vmatprep.subr.mxu0 0.0
    %72 = vmatpush1.msra.mxu0 %v53
    %73 = vmatprep.subr.mxu0 0.0
    %74 = vmatpush1.msra.mxu0 %v54
    %75 = vmatprep.subr.mxu0 0.0
    %76 = vmatpush1.msra.mxu0 %v55
    %77 = vmatprep.subr.mxu0 0.0
    %78 = vmatpush1.msra.mxu0 %v56
    %79 = vmatprep.subr.mxu0 0.0
    %80 = vmatpush1.msra.mxu0 0.0
    %81 = vmatprep.subr.mxu0 0.0
    %82 = vmatpush1.msra.mxu0 0.0
    %83 = vmatprep.subr.mxu0 0.0
    %84 = vmatpush1.msra.mxu0 0.0
    %85 = vmatprep.subr.mxu0 0.0
    %86 = vmatpush1.msra.mxu0 0.0
    %87 = vmatprep.subr.mxu0 0.0
    %88 = vmatpush1.msra.mxu0 0.0
    %89 = vmatprep.subr.mxu0 0.0
    %90 = vmatpush1.msra.mxu0 0.0
    %91 = vmatprep.subr.mxu0 0.0
    %92 = vmatpush1.msra.mxu0 0.0
    %93 = vmatprep.subr.mxu0 0.0
    %94 = vmatpush1.msra.mxu0 0.0
    %95 = vmatprep.subr.mxu0 0.0
    %96 = vmatpush1.msra.mxu0 0.0
    %97 = vmatprep.subr.mxu0 0.0
    %98 = vmatpush1.msra.mxu0 0.0
    %99 = vmatprep.subr.mxu0 0.0
    %100 = vmatpush1.msra.mxu0 0.0
    %101 = vmatprep.subr.mxu0 0.0
    %102 = vmatpush1.msra.mxu0 0.0
    %103 = vmatprep.subr.mxu0 0.0
    %104 = vmatpush1.msra.mxu0 0.0
    %105 = vmatprep.subr.mxu0 0.0
    %106 = vmatpush1.msra.mxu0 0.0
    %107 = vmatprep.subr.mxu0 0.0
    %108 = vmatpush1.msra.mxu0 0.0
    %109 = vmatprep.subr.mxu0 0.0
    %110 = vmatpush1.msra.mxu0 0.0
    %111 = vmatprep.subr.mxu0 0.0
    %112 = vmatpush1.msra.mxu0 0.0
    %113 = vmatprep.subr.mxu0 0.0
    %114 = vmatpush1.msra.mxu0 0.0
    %115 = vmatprep.subr.mxu0 0.0
    %116 = vmatpush1.msra.mxu0 0.0
    %117 = vmatprep.subr.mxu0 0.0
    %118 = vmatpush1.msra.mxu0 0.0
    %119 = vmatprep.subr.mxu0 0.0
    %120 = vmatpush1.msra.mxu0 0.0
    %121 = vmatprep.subr.mxu0 0.0
    %122 = vmatpush1.msra.mxu0 0.0
    %123 = vmatprep.subr.mxu0 0.0
    %124 = vmatpush1.msra.mxu0 0.0
    %125 = vmatprep.subr.mxu0 0.0
    %126 = vmatpush1.msra.mxu0 0.0
    %127 = vmatprep.subr.mxu0 0.0
    %128 = vmatpush1.msra.mxu0 0.0
    %129 = vmatprep.subr.mxu0 0.0
    %130 = vmatpush1.msra.mxu0 0.0
    %131 = vmatprep.subr.mxu0 0.0
    %132 = vmatpush1.msra.mxu0 0.0
    %133 = vmatprep.subr.mxu0 0.0
    %134 = vmatpush1.msra.mxu0 0.0
    %135 = vmatprep.mubr.f32.mxu0 0.0
    %136 = vmatmul.mubr.f32.gmra.mrb[0].mxu0 %v66
    %v137 = vpop.f32.mrb[0].mxu0
    %v138 = vadd.f32 %v62, %v137
    %v139 = vpop.f32.mrb[0].mxu0
    %140 = vmatprep.mubr.f32.mxu0 0.0
    %141 = vmatmul.mubr.f32.gmra.mrb[0].mxu0 %v69
    %v142 = vpop.f32.mrb[0].mxu0
    %v143 = vadd.f32 %v62, %v142
    %v144 = vpop.f32.mrb[0].mxu0
    %145 = vdwg.mxu0
    %v146 = vld [vmem:[%s13] sm:$0xff]
    %v147 = vld [vmem:[%s13 + $0x8] sm:$0xff]
    %v148 = vld [vmem:[%s13 + $0x10] sm:$0xff]
    %v149 = vld [vmem:[%s13 + $0x18] sm:$0xff]
    %v150 = vld [vmem:[%s13 + $0x20] sm:$0xff]
    %v151 = vld [vmem:[%s13 + $0x28] sm:$0xff]
    %v152 = vld [vmem:[%s13 + $0x30] sm:$0xff]
    %v153 = vld [vmem:[%s13 + $0x38] sm:$0xff]
    %v154 = vmul.f32 %v138, %v146
    %v155 = vmul.f32 %v143, %v147
    %v156 = vmul.f32 %v138, %v148
    %v157 = vmul.f32 %v143, %v149
    %v158 = vmul.f32 %v138, %v150
    %v159 = vmul.f32 %v143, %v151
    %v160 = vmul.f32 %v138, %v152
    %v161 = vmul.f32 %v143, %v153
    %v162 = vld [vmem:[%s14] sm:$0xff]
    %v163 = vld [vmem:[%s14 + $0x8] sm:$0xff]
    %v164 = vld [vmem:[%s14 + $0x10] sm:$0xff]
    %v165 = vld [vmem:[%s14 + $0x18] sm:$0xff]
    %v166 = vld [vmem:[%s14 + $0x20] sm:$0xff]
    %v167 = vld [vmem:[%s14 + $0x28] sm:$0xff]
    %v168 = vld [vmem:[%s14 + $0x30] sm:$0xff]
    %v169 = vld [vmem:[%s14 + $0x38] sm:$0xff]
    %172 = vrot.lane.b32.xlu0 %v138, 96
    %v173 = vpop.permute.xlu0 %172
    %174 = vrot.lane.b32.xlu0 %v143, 96
    %v175 = vpop.permute.xlu0 %174
    %v177 = vsel %vm64, %v154, 0
    %v180 = vsel %vm64, %v155, 0
    %v183 = vsel %vm64, %v156, 0
    %v186 = vsel %vm64, %v157, 0
    %v189 = vsel %vm64, %v158, 0
    %v192 = vsel %vm64, %v159, 0
    %v195 = vsel %vm64, %v160, 0
    %v198 = vsel %vm64, %v161, 0
    %v200 = vsel %vm64, %v173, 0
    %v202 = vsel %vm64, %v175, 0
    %204 = vmatprep.subr.mxu0 0.0
    %205 = vmatpush1.xpose.msra.mxu0 %v200
    %206 = vmatprep.subr.mxu0 0.0
    %207 = vmatpush1.xpose.msra.mxu0 %v202
    %208 = vmatprep.subr.mxu0 0.0
    %209 = vmatpush1.xpose.msra.mxu0 0.0
    %210 = vmatprep.subr.mxu0 0.0
    %211 = vmatpush1.xpose.msra.mxu0 0.0
    %212 = vmatprep.subr.mxu0 0.0
    %213 = vmatpush1.xpose.msra.mxu0 0.0
    %214 = vmatprep.subr.mxu0 0.0
    %215 = vmatpush1.xpose.msra.mxu0 0.0
    %216 = vmatprep.subr.mxu0 0.0
    %217 = vmatpush1.xpose.msra.mxu0 0.0
    %218 = vmatprep.subr.mxu0 0.0
    %219 = vmatpush1.xpose.msra.mxu0 0.0
    %220 = vmatprep.subr.mxu0 0.0
    %221 = vmatpush1.xpose.msra.mxu0 0.0
    %222 = vmatprep.subr.mxu0 0.0
    %223 = vmatpush1.xpose.msra.mxu0 0.0
    %224 = vmatprep.subr.mxu0 0.0
    %225 = vmatpush1.xpose.msra.mxu0 0.0
    %226 = vmatprep.subr.mxu0 0.0
    %227 = vmatpush1.xpose.msra.mxu0 0.0
    %228 = vmatprep.subr.mxu0 0.0
    %229 = vmatpush1.xpose.msra.mxu0 0.0
    %230 = vmatprep.subr.mxu0 0.0
    %231 = vmatpush1.xpose.msra.mxu0 0.0
    %232 = vmatprep.subr.mxu0 0.0
    %233 = vmatpush1.xpose.msra.mxu0 0.0
    %234 = vmatprep.subr.mxu0 0.0
    %235 = vmatpush1.xpose.msra.mxu0 0.0
    %236 = vmatprep.subr.mxu0 0.0
    %237 = vmatpush1.xpose.msra.mxu0 0.0
    %238 = vmatprep.subr.mxu0 0.0
    %239 = vmatpush1.xpose.msra.mxu0 0.0
    %240 = vmatprep.subr.mxu0 0.0
    %241 = vmatpush1.xpose.msra.mxu0 0.0
    %242 = vmatprep.subr.mxu0 0.0
    %243 = vmatpush1.xpose.msra.mxu0 0.0
    %244 = vmatprep.subr.mxu0 0.0
    %245 = vmatpush1.xpose.msra.mxu0 0.0
    %246 = vmatprep.subr.mxu0 0.0
    %247 = vmatpush1.xpose.msra.mxu0 0.0
    %248 = vmatprep.subr.mxu0 0.0
    %249 = vmatpush1.xpose.msra.mxu0 0.0
    %250 = vmatprep.subr.mxu0 0.0
    %251 = vmatpush1.xpose.msra.mxu0 0.0
    %252 = vmatprep.subr.mxu0 0.0
    %253 = vmatpush1.xpose.msra.mxu0 0.0
    %254 = vmatprep.subr.mxu0 0.0
    %255 = vmatpush1.xpose.msra.mxu0 0.0
    %256 = vmatprep.subr.mxu0 0.0
    %257 = vmatpush1.xpose.msra.mxu0 0.0
    %258 = vmatprep.subr.mxu0 0.0
    %259 = vmatpush1.xpose.msra.mxu0 0.0
    %260 = vmatprep.subr.mxu0 0.0
    %261 = vmatpush1.xpose.msra.mxu0 0.0
    %262 = vmatprep.subr.mxu0 0.0
    %263 = vmatpush1.xpose.msra.mxu0 0.0
    %264 = vmatprep.subr.mxu0 0.0
    %265 = vmatpush1.xpose.msra.mxu0 0.0
    %266 = vmatprep.subr.mxu0 0.0
    %267 = vmatpush1.xpose.msra.mxu0 0.0
    %268 = vmatprep.mubr.f32.mxu0 0.0
    %269 = vmatmul.mubr.f32.gmra.mrb[0].mxu0 %v177
    %v270 = vpop.f32.mrb[0].mxu0
    %v271 = vadd.f32 %v162, %v270
    %v272 = vpop.f32.mrb[0].mxu0
    %273 = vmatprep.mubr.f32.mxu0 0.0
    %274 = vmatmul.mubr.f32.gmra.mrb[0].mxu0 %v180
    %v275 = vpop.f32.mrb[0].mxu0
    %v276 = vadd.f32 %v163, %v275
    %v277 = vpop.f32.mrb[0].mxu0
    %278 = vmatprep.mubr.f32.mxu0 0.0
    %279 = vmatmul.mubr.f32.gmra.mrb[0].mxu0 %v183
    %v280 = vpop.f32.mrb[0].mxu0
    %v281 = vadd.f32 %v164, %v280
    %v282 = vpop.f32.mrb[0].mxu0
    %283 = vmatprep.mubr.f32.mxu0 0.0
    %284 = vmatmul.mubr.f32.gmra.mrb[0].mxu0 %v186
    %v285 = vpop.f32.mrb[0].mxu0
    %v286 = vadd.f32 %v165, %v285
    %v287 = vpop.f32.mrb[0].mxu0
    %288 = vmatprep.mubr.f32.mxu0 0.0
    %289 = vmatmul.mubr.f32.gmra.mrb[0].mxu0 %v189
    %v290 = vpop.f32.mrb[0].mxu0
    %v291 = vadd.f32 %v166, %v290
    %v292 = vpop.f32.mrb[0].mxu0
    %293 = vmatprep.mubr.f32.mxu0 0.0
    %294 = vmatmul.mubr.f32.gmra.mrb[0].mxu0 %v192
    %v295 = vpop.f32.mrb[0].mxu0
    %v296 = vadd.f32 %v167, %v295
    %v297 = vpop.f32.mrb[0].mxu0
    %298 = vmatprep.mubr.f32.mxu0 0.0
    %299 = vmatmul.mubr.f32.gmra.mrb[0].mxu0 %v195
    %v300 = vpop.f32.mrb[0].mxu0
    %v301 = vadd.f32 %v168, %v300
    %v302 = vpop.f32.mrb[0].mxu0
    %303 = vmatprep.mubr.f32.mxu0 0.0
    %304 = vmatmul.mubr.f32.gmra.mrb[0].mxu0 %v198
    %v305 = vpop.f32.mrb[0].mxu0
    %v306 = vadd.f32 %v169, %v305
    %v307 = vpop.f32.mrb[0].mxu0
    %308 = vdwg.mxu0
    %vm309 = vcmask 130048
    %v310 = vsel %vm309, %v271, -inf
    %311 = vmax.xlane.f32.xlu0 %v310
    %v312 = vpop.xlane.xlu0 %311
    %v313 = vsel %vm309, %v276, -inf
    %314 = vmax.xlane.f32.xlu0 %v313
    %v315 = vpop.xlane.xlu0 %314
    %v316 = vsel %vm309, %v281, -inf
    %317 = vmax.xlane.f32.xlu0 %v316
    %v318 = vpop.xlane.xlu0 %317
    %v319 = vsel %vm309, %v286, -inf
    %320 = vmax.xlane.f32.xlu0 %v319
    %v321 = vpop.xlane.xlu0 %320
    %v322 = vsel %vm309, %v291, -inf
    %323 = vmax.xlane.f32.xlu0 %v322
    %v324 = vpop.xlane.xlu0 %323
    %v325 = vsel %vm309, %v296, -inf
    %326 = vmax.xlane.f32.xlu0 %v325
    %v327 = vpop.xlane.xlu0 %326
    %v328 = vsel %vm309, %v301, -inf
    %329 = vmax.xlane.f32.xlu0 %v328
    %v330 = vpop.xlane.xlu0 %329
    %v331 = vsel %vm309, %v306, -inf
    %332 = vmax.xlane.f32.xlu0 %v331
    %v333 = vpop.xlane.xlu0 %332
    %v334 = vsub.f32 %v271, %v312
    %v335 = vsub.f32 %v276, %v315
    %v336 = vsub.f32 %v281, %v318
    %v337 = vsub.f32 %v286, %v321
    %v338 = vsub.f32 %v291, %v324
    %v339 = vsub.f32 %v296, %v327
    %v340 = vsub.f32 %v301, %v330
    %v341 = vsub.f32 %v306, %v333
    %v342 = vmul.f32 %v334, 1.442695
    %v343 = vpow.pop %v342
    %v344 = vmul.f32 %v335, 1.442695
    %v345 = vpow.pop %v344
    %v346 = vmul.f32 %v336, 1.442695
    %v347 = vpow.pop %v346
    %v348 = vmul.f32 %v337, 1.442695
    %v349 = vpow.pop %v348
    %v350 = vmul.f32 %v338, 1.442695
    %v351 = vpow.pop %v350
    %v352 = vmul.f32 %v339, 1.442695
    %v353 = vpow.pop %v352
    %v354 = vmul.f32 %v340, 1.442695
    %v355 = vpow.pop %v354
    %v356 = vmul.f32 %v341, 1.442695
    %v357 = vpow.pop %v356
    %v358 = vsel %vm309, %v343, 0.0
    %359 = vadd.xlane.f32.xlu0 %v358
    %v360 = vpop.xlane.xlu0 %359
    %v361 = vsel %vm309, %v345, 0.0
    %362 = vadd.xlane.f32.xlu0 %v361
    %v363 = vpop.xlane.xlu0 %362
    %v364 = vsel %vm309, %v347, 0.0
    %365 = vadd.xlane.f32.xlu0 %v364
    %v366 = vpop.xlane.xlu0 %365
    %v367 = vsel %vm309, %v349, 0.0
    %368 = vadd.xlane.f32.xlu0 %v367
    %v369 = vpop.xlane.xlu0 %368
    %v370 = vsel %vm309, %v351, 0.0
    %371 = vadd.xlane.f32.xlu0 %v370
    %v372 = vpop.xlane.xlu0 %371
    %v373 = vsel %vm309, %v353, 0.0
    %374 = vadd.xlane.f32.xlu0 %v373
    %v375 = vpop.xlane.xlu0 %374
    %v376 = vsel %vm309, %v355, 0.0
    %377 = vadd.xlane.f32.xlu0 %v376
    %v378 = vpop.xlane.xlu0 %377
    %v379 = vsel %vm309, %v357, 0.0
    %380 = vadd.xlane.f32.xlu0 %v379
    %v381 = vpop.xlane.xlu0 %380
    %v382 = vrcp.pop %v360
    %v383 = vmul.f32 %v343, %v382
    %v384 = vrcp.pop %v363
    %v385 = vmul.f32 %v345, %v384
    %v386 = vrcp.pop %v366
    %v387 = vmul.f32 %v347, %v386
    %v388 = vrcp.pop %v369
    %v389 = vmul.f32 %v349, %v388
    %v390 = vrcp.pop %v372
    %v391 = vmul.f32 %v351, %v390
    %v392 = vrcp.pop %v375
    %v393 = vmul.f32 %v353, %v392
    %v394 = vrcp.pop %v378
    %v395 = vmul.f32 %v355, %v394
    %v396 = vrcp.pop %v381
    %v397 = vmul.f32 %v357, %v396
    %398 = vrot.lane.b32.xlu0 %v138, 64
    %v399 = vpop.permute.xlu0 %398
    %400 = vrot.lane.b32.xlu0 %v143, 64
    %v401 = vpop.permute.xlu0 %400
    %v405 = vsel %vm309, %v383, 0
    %v408 = vsel %vm309, %v385, 0
    %v411 = vsel %vm309, %v387, 0
    %v414 = vsel %vm309, %v389, 0
    %v417 = vsel %vm309, %v391, 0
    %v420 = vsel %vm309, %v393, 0
    %v423 = vsel %vm309, %v395, 0
    %v426 = vsel %vm309, %v397, 0
    %428 = vmatprep.subr.mxu0 0.0
    %429 = vmatpush1.msra.mxu0 %v399
    %430 = vmatprep.subr.mxu0 0.0
    %431 = vmatpush1.msra.mxu0 %v401
    %432 = vmatprep.subr.mxu0 0.0
    %433 = vmatpush1.msra.mxu0 0.0
    %434 = vmatprep.subr.mxu0 0.0
    %435 = vmatpush1.msra.mxu0 0.0
    %436 = vmatprep.subr.mxu0 0.0
    %437 = vmatpush1.msra.mxu0 0.0
    %438 = vmatprep.subr.mxu0 0.0
    %439 = vmatpush1.msra.mxu0 0.0
    %440 = vmatprep.subr.mxu0 0.0
    %441 = vmatpush1.msra.mxu0 0.0
    %442 = vmatprep.subr.mxu0 0.0
    %443 = vmatpush1.msra.mxu0 0.0
    %444 = vmatprep.subr.mxu0 0.0
    %445 = vmatpush1.msra.mxu0 0.0
    %446 = vmatprep.subr.mxu0 0.0
    %447 = vmatpush1.msra.mxu0 0.0
    %448 = vmatprep.subr.mxu0 0.0
    %449 = vmatpush1.msra.mxu0 0.0
    %450 = vmatprep.subr.mxu0 0.0
    %451 = vmatpush1.msra.mxu0 0.0
    %452 = vmatprep.subr.mxu0 0.0
    %453 = vmatpush1.msra.mxu0 0.0
    %454 = vmatprep.subr.mxu0 0.0
    %455 = vmatpush1.msra.mxu0 0.0
    %456 = vmatprep.subr.mxu0 0.0
    %457 = vmatpush1.msra.mxu0 0.0
    %458 = vmatprep.subr.mxu0 0.0
    %459 = vmatpush1.msra.mxu0 0.0
    %460 = vmatprep.subr.mxu0 0.0
    %461 = vmatpush1.msra.mxu0 0.0
    %462 = vmatprep.subr.mxu0 0.0
    %463 = vmatpush1.msra.mxu0 0.0
    %464 = vmatprep.subr.mxu0 0.0
    %465 = vmatpush1.msra.mxu0 0.0
    %466 = vmatprep.subr.mxu0 0.0
    %467 = vmatpush1.msra.mxu0 0.0
    %468 = vmatprep.subr.mxu0 0.0
    %469 = vmatpush1.msra.mxu0 0.0
    %470 = vmatprep.subr.mxu0 0.0
    %471 = vmatpush1.msra.mxu0 0.0
    %472 = vmatprep.subr.mxu0 0.0
    %473 = vmatpush1.msra.mxu0 0.0
    %474 = vmatprep.subr.mxu0 0.0
    %475 = vmatpush1.msra.mxu0 0.0
    %476 = vmatprep.subr.mxu0 0.0
    %477 = vmatpush1.msra.mxu0 0.0
    %478 = vmatprep.subr.mxu0 0.0
    %479 = vmatpush1.msra.mxu0 0.0
    %480 = vmatprep.subr.mxu0 0.0
    %481 = vmatpush1.msra.mxu0 0.0
    %482 = vmatprep.subr.mxu0 0.0
    %483 = vmatpush1.msra.mxu0 0.0
    %484 = vmatprep.subr.mxu0 0.0
    %485 = vmatpush1.msra.mxu0 0.0
    %486 = vmatprep.subr.mxu0 0.0
    %487 = vmatpush1.msra.mxu0 0.0
    %488 = vmatprep.subr.mxu0 0.0
    %489 = vmatpush1.msra.mxu0 0.0
    %490 = vmatprep.subr.mxu0 0.0
    %491 = vmatpush1.msra.mxu0 0.0
    %492 = vmatprep.mubr.f32.mxu0 0.0
    %493 = vmatmul.mubr.f32.gmra.mrb[0].mxu0 %v405
    %v494 = vpop.f32.mrb[0].mxu0
    %v495 = vadd.f32 0.0, %v494
    %v496 = vpop.f32.mrb[0].mxu0
    %497 = vmatprep.mubr.f32.mxu0 0.0
    %498 = vmatmul.mubr.f32.gmra.mrb[0].mxu0 %v408
    %v499 = vpop.f32.mrb[0].mxu0
    %v500 = vadd.f32 0.0, %v499
    %v501 = vpop.f32.mrb[0].mxu0
    %502 = vmatprep.mubr.f32.mxu0 0.0
    %503 = vmatmul.mubr.f32.gmra.mrb[0].mxu0 %v411
    %v504 = vpop.f32.mrb[0].mxu0
    %v505 = vadd.f32 0.0, %v504
    %v506 = vpop.f32.mrb[0].mxu0
    %507 = vmatprep.mubr.f32.mxu0 0.0
    %508 = vmatmul.mubr.f32.gmra.mrb[0].mxu0 %v414
    %v509 = vpop.f32.mrb[0].mxu0
    %v510 = vadd.f32 0.0, %v509
    %v511 = vpop.f32.mrb[0].mxu0
    %512 = vmatprep.mubr.f32.mxu0 0.0
    %513 = vmatmul.mubr.f32.gmra.mrb[0].mxu0 %v417
    %v514 = vpop.f32.mrb[0].mxu0
    %v515 = vadd.f32 0.0, %v514
    %v516 = vpop.f32.mrb[0].mxu0
    %517 = vmatprep.mubr.f32.mxu0 0.0
    %518 = vmatmul.mubr.f32.gmra.mrb[0].mxu0 %v420
    %v519 = vpop.f32.mrb[0].mxu0
    %v520 = vadd.f32 0.0, %v519
    %v521 = vpop.f32.mrb[0].mxu0
    %522 = vmatprep.mubr.f32.mxu0 0.0
    %523 = vmatmul.mubr.f32.gmra.mrb[0].mxu0 %v423
    %v524 = vpop.f32.mrb[0].mxu0
    %v525 = vadd.f32 0.0, %v524
    %v526 = vpop.f32.mrb[0].mxu0
    %527 = vmatprep.mubr.f32.mxu0 0.0
    %528 = vmatmul.mubr.f32.gmra.mrb[0].mxu0 %v426
    %v529 = vpop.f32.mrb[0].mxu0
    %v530 = vadd.f32 0.0, %v529
    %v531 = vpop.f32.mrb[0].mxu0
    %532 = vdwg.mxu0
    %v533 = vmul.f32 %v495, %v146
    %v534 = vmul.f32 %v500, %v147
    %v535 = vmul.f32 %v505, %v148
    %v536 = vmul.f32 %v510, %v149
    %v537 = vmul.f32 %v515, %v150
    %v538 = vmul.f32 %v520, %v151
    %v539 = vmul.f32 %v525, %v152
    %v540 = vmul.f32 %v530, %v153
    %v541 = vadd.f32 %v533, %v535
    %v542 = vadd.f32 %v534, %v536
    %v543 = vadd.f32 %v541, %v537
    %v544 = vadd.f32 %v542, %v538
    %v545 = vadd.f32 %v543, %v539
    %v546 = vadd.f32 %v544, %v540
    %v547 = vld [vmem:[%s3] sm:$0xff]
    %v548 = vld [vmem:[%s3 + $0x8] sm:$0xff]
    %v549 = vld [vmem:[%s3 + $0x10] sm:$0xff]
    %v550 = vld [vmem:[%s3 + $0x18] sm:$0xff]
    %v551 = vld [vmem:[%s4] sm:$0x1]
    %v553 = vlaneseq
    %v554 = vshrl.u32 %v553, 7
    %v555 = vsub.s32 0, %v554
    %v556 = vrot.slane %v551, %v555
    %v559 = vsel %vm64, %v545, 0
    %v562 = vsel %vm64, %v546, 0
    %564 = vmatprep.subr.mxu0 0.0
    %565 = vmatpush1.msra.mxu0 %v547
    %566 = vmatprep.subr.mxu0 0.0
    %567 = vmatpush1.msra.mxu0 %v548
    %568 = vmatprep.subr.mxu0 0.0
    %569 = vmatpush1.msra.mxu0 %v549
    %570 = vmatprep.subr.mxu0 0.0
    %571 = vmatpush1.msra.mxu0 %v550
    %572 = vmatprep.subr.mxu0 0.0
    %573 = vmatpush1.msra.mxu0 0.0
    %574 = vmatprep.subr.mxu0 0.0
    %575 = vmatpush1.msra.mxu0 0.0
    %576 = vmatprep.subr.mxu0 0.0
    %577 = vmatpush1.msra.mxu0 0.0
    %578 = vmatprep.subr.mxu0 0.0
    %579 = vmatpush1.msra.mxu0 0.0
    %580 = vmatprep.subr.mxu0 0.0
    %581 = vmatpush1.msra.mxu0 0.0
    %582 = vmatprep.subr.mxu0 0.0
    %583 = vmatpush1.msra.mxu0 0.0
    %584 = vmatprep.subr.mxu0 0.0
    %585 = vmatpush1.msra.mxu0 0.0
    %586 = vmatprep.subr.mxu0 0.0
    %587 = vmatpush1.msra.mxu0 0.0
    %588 = vmatprep.subr.mxu0 0.0
    %589 = vmatpush1.msra.mxu0 0.0
    %590 = vmatprep.subr.mxu0 0.0
    %591 = vmatpush1.msra.mxu0 0.0
    %592 = vmatprep.subr.mxu0 0.0
    %593 = vmatpush1.msra.mxu0 0.0
    %594 = vmatprep.subr.mxu0 0.0
    %595 = vmatpush1.msra.mxu0 0.0
    %596 = vmatprep.subr.mxu0 0.0
    %597 = vmatpush1.msra.mxu0 0.0
    %598 = vmatprep.subr.mxu0 0.0
    %599 = vmatpush1.msra.mxu0 0.0
    %600 = vmatprep.subr.mxu0 0.0
    %601 = vmatpush1.msra.mxu0 0.0
    %602 = vmatprep.subr.mxu0 0.0
    %603 = vmatpush1.msra.mxu0 0.0
    %604 = vmatprep.subr.mxu0 0.0
    %605 = vmatpush1.msra.mxu0 0.0
    %606 = vmatprep.subr.mxu0 0.0
    %607 = vmatpush1.msra.mxu0 0.0
    %608 = vmatprep.subr.mxu0 0.0
    %609 = vmatpush1.msra.mxu0 0.0
    %610 = vmatprep.subr.mxu0 0.0
    %611 = vmatpush1.msra.mxu0 0.0
    %612 = vmatprep.subr.mxu0 0.0
    %613 = vmatpush1.msra.mxu0 0.0
    %614 = vmatprep.subr.mxu0 0.0
    %615 = vmatpush1.msra.mxu0 0.0
    %616 = vmatprep.subr.mxu0 0.0
    %617 = vmatpush1.msra.mxu0 0.0
    %618 = vmatprep.subr.mxu0 0.0
    %619 = vmatpush1.msra.mxu0 0.0
    %620 = vmatprep.subr.mxu0 0.0
    %621 = vmatpush1.msra.mxu0 0.0
    %622 = vmatprep.subr.mxu0 0.0
    %623 = vmatpush1.msra.mxu0 0.0
    %624 = vmatprep.subr.mxu0 0.0
    %625 = vmatpush1.msra.mxu0 0.0
    %626 = vmatprep.subr.mxu0 0.0
    %627 = vmatpush1.msra.mxu0 0.0
    %628 = vmatprep.mubr.f32.mxu0 0.0
    %629 = vmatmul.mubr.f32.gmra.mrb[0].mxu0 %v559
    %v630 = vpop.f32.mrb[0].mxu0
    %v631 = vadd.f32 %v556, %v630
    %v632 = vpop.f32.mrb[0].mxu0
    %633 = vmatprep.mubr.f32.mxu0 0.0
    %634 = vmatmul.mubr.f32.gmra.mrb[0].mxu0 %v562
    %v635 = vpop.f32.mrb[0].mxu0
    %v636 = vadd.f32 %v556, %v635
    %v637 = vpop.f32.mrb[0].mxu0
    %638 = vdwg.mxu0
    %v639 = vadd.f32 %v51, %v631
    %v640 = vadd.f32 %v52, %v636
    %v641 = vld [vmem:[%s5] sm:$0x1]
    %v642 = vld [vmem:[%s6] sm:$0x1]
    %v643 = vsel %vm64, %v639, 0.0
    %644 = vadd.xlane.f32.xlu0 %v643
    %v645 = vpop.xlane.xlu0 %644
    %v646 = vsel %vm64, %v640, 0.0
    %647 = vadd.xlane.f32.xlu0 %v646
    %v648 = vpop.xlane.xlu0 %647
    %v649 = vrcp.pop 32.0
    %v650 = vmul.f32 %v645, %v649
    %v651 = vmul.f32 %v648, %v649
    %v652 = vsub.f32 %v639, %v650
    %v653 = vsub.f32 %v640, %v651
    %v654 = vmul.f32 %v652, %v652
    %v655 = vmul.f32 %v653, %v653
    %v656 = vsel %vm64, %v654, 0.0
    %657 = vadd.xlane.f32.xlu0 %v656
    %v658 = vpop.xlane.xlu0 %657
    %v659 = vsel %vm64, %v655, 0.0
    %660 = vadd.xlane.f32.xlu0 %v659
    %v661 = vpop.xlane.xlu0 %660
    %v662 = vmul.f32 %v658, %v649
    %v663 = vmul.f32 %v661, %v649
    %v664 = vadd.f32 %v662, 1e-05
    %v665 = vadd.f32 %v663, 1e-05
    %v666 = vrsqrt.pop %v664
    %v667 = vrsqrt.pop %v665
    %v668 = vmul.f32 %v652, %v666
    %v669 = vmul.f32 %v653, %v667
    %v671 = vlaneseq
    %v672 = vshrl.u32 %v671, 7
    %v673 = vsub.s32 0, %v672
    %v674 = vrot.slane %v641, %v673
    %v676 = vmul.f32 %v668, %v674
    %v677 = vmul.f32 %v669, %v674
    %v679 = vlaneseq
    %v680 = vshrl.u32 %v679, 7
    %v681 = vsub.s32 0, %v680
    %v682 = vrot.slane %v642, %v681
    %v684 = vadd.f32 %v676, %v682
    %v685 = vadd.f32 %v677, %v682
    %v686 = vld [vmem:[%s7] sm:$0xff]
    %v687 = vld [vmem:[%s7 + $0x8] sm:$0xff]
    %v688 = vld [vmem:[%s7 + $0x10] sm:$0xff]
    %v689 = vld [vmem:[%s7 + $0x18] sm:$0xff]
    %v690 = vld [vmem:[%s8] sm:$0x1]
    %v692 = vlaneseq
    %v693 = vshrl.u32 %v692, 7
    %v694 = vsub.s32 0, %v693
    %v695 = vrot.slane %v690, %v694
    %v698 = vsel %vm64, %v684, 0
    %v701 = vsel %vm64, %v685, 0
    %703 = vmatprep.subr.mxu0 0.0
    %704 = vmatpush1.msra.mxu0 %v686
    %705 = vmatprep.subr.mxu0 0.0
    %706 = vmatpush1.msra.mxu0 %v687
    %707 = vmatprep.subr.mxu0 0.0
    %708 = vmatpush1.msra.mxu0 %v688
    %709 = vmatprep.subr.mxu0 0.0
    %710 = vmatpush1.msra.mxu0 %v689
    %711 = vmatprep.subr.mxu0 0.0
    %712 = vmatpush1.msra.mxu0 0.0
    %713 = vmatprep.subr.mxu0 0.0
    %714 = vmatpush1.msra.mxu0 0.0
    %715 = vmatprep.subr.mxu0 0.0
    %716 = vmatpush1.msra.mxu0 0.0
    %717 = vmatprep.subr.mxu0 0.0
    %718 = vmatpush1.msra.mxu0 0.0
    %719 = vmatprep.subr.mxu0 0.0
    %720 = vmatpush1.msra.mxu0 0.0
    %721 = vmatprep.subr.mxu0 0.0
    %722 = vmatpush1.msra.mxu0 0.0
    %723 = vmatprep.subr.mxu0 0.0
    %724 = vmatpush1.msra.mxu0 0.0
    %725 = vmatprep.subr.mxu0 0.0
    %726 = vmatpush1.msra.mxu0 0.0
    %727 = vmatprep.subr.mxu0 0.0
    %728 = vmatpush1.msra.mxu0 0.0
    %729 = vmatprep.subr.mxu0 0.0
    %730 = vmatpush1.msra.mxu0 0.0
    %731 = vmatprep.subr.mxu0 0.0
    %732 = vmatpush1.msra.mxu0 0.0
    %733 = vmatprep.subr.mxu0 0.0
    %734 = vmatpush1.msra.mxu0 0.0
    %735 = vmatprep.subr.mxu0 0.0
    %736 = vmatpush1.msra.mxu0 0.0
    %737 = vmatprep.subr.mxu0 0.0
    %738 = vmatpush1.msra.mxu0 0.0
    %739 = vmatprep.subr.mxu0 0.0
    %740 = vmatpush1.msra.mxu0 0.0
    %741 = vmatprep.subr.mxu0 0.0
    %742 = vmatpush1.msra.mxu0 0.0
    %743 = vmatprep.subr.mxu0 0.0
    %744 = vmatpush1.msra.mxu0 0.0
    %745 = vmatprep.subr.mxu0 0.0
    %746 = vmatpush1.msra.mxu0 0.0
    %747 = vmatprep.subr.mxu0 0.0
    %748 = vmatpush1.msra.mxu0 0.0
    %749 = vmatprep.subr.mxu0 0.0
    %750 = vmatpush1.msra.mxu0 0.0
    %751 = vmatprep.subr.mxu0 0.0
    %752 = vmatpush1.msra.mxu0 0.0
    %753 = vmatprep.subr.mxu0 0.0
    %754 = vmatpush1.msra.mxu0 0.0
    %755 = vmatprep.subr.mxu0 0.0
    %756 = vmatpush1.msra.mxu0 0.0
    %757 = vmatprep.subr.mxu0 0.0
    %758 = vmatpush1.msra.mxu0 0.0
    %759 = vmatprep.subr.mxu0 0.0
    %760 = vmatpush1.msra.mxu0 0.0
    %761 = vmatprep.subr.mxu0 0.0
    %762 = vmatpush1.msra.mxu0 0.0
    %763 = vmatprep.subr.mxu0 0.0
    %764 = vmatpush1.msra.mxu0 0.0
    %765 = vmatprep.subr.mxu0 0.0
    %766 = vmatpush1.msra.mxu0 0.0
    %767 = vmatprep.mubr.f32.mxu0 0.0
    %768 = vmatmul.mubr.f32.gmra.mrb[0].mxu0 %v698
    %v769 = vpop.f32.mrb[0].mxu0
    %v770 = vadd.f32 %v695, %v769
    %v771 = vpop.f32.mrb[0].mxu0
    %772 = vmatprep.mubr.f32.mxu0 0.0
    %773 = vmatmul.mubr.f32.gmra.mrb[0].mxu0 %v701
    %v774 = vpop.f32.mrb[0].mxu0
    %v775 = vadd.f32 %v695, %v774
    %v776 = vpop.f32.mrb[0].mxu0
    %777 = vdwg.mxu0
    %v778 = vmul.f32 %v770, 0.5
    %v779 = vmul.f32 %v775, 0.5
    %v780 = vmul.f32 %v770, 0.70710677
    %v781 = vmul.f32 %v775, 0.70710677
    %v782 = verf.f32.pop %v780
    %v783 = verf.f32.pop %v781
    %v784 = vadd.f32 %v782, 1.0
    %v785 = vadd.f32 %v783, 1.0
    %v786 = vmul.f32 %v778, %v784
    %v787 = vmul.f32 %v779, %v785
    %v788 = vld [vmem:[%s9] sm:$0xff]
    %v789 = vld [vmem:[%s9 + $0x8] sm:$0xff]
    %v790 = vld [vmem:[%s9 + $0x10] sm:$0xff]
    %v791 = vld [vmem:[%s9 + $0x18] sm:$0xff]
    %v792 = vld [vmem:[%s9 + $0x20] sm:$0xff]
    %v793 = vld [vmem:[%s9 + $0x28] sm:$0xff]
    %v794 = vld [vmem:[%s9 + $0x30] sm:$0xff]
    %v795 = vld [vmem:[%s9 + $0x38] sm:$0xff]
    %v796 = vld [vmem:[%s9 + $0x40] sm:$0xff]
    %v797 = vld [vmem:[%s9 + $0x48] sm:$0xff]
    %v798 = vld [vmem:[%s9 + $0x50] sm:$0xff]
    %v799 = vld [vmem:[%s9 + $0x58] sm:$0xff]
    %v800 = vld [vmem:[%s9 + $0x60] sm:$0xff]
    %v801 = vld [vmem:[%s9 + $0x68] sm:$0xff]
    %v802 = vld [vmem:[%s9 + $0x70] sm:$0xff]
    %v803 = vld [vmem:[%s9 + $0x78] sm:$0xff]
    %v804 = vld [vmem:[%s10] sm:$0x1]
    %v806 = vlaneseq
    %v807 = vshrl.u32 %v806, 7
    %v808 = vsub.s32 0, %v807
    %v809 = vrot.slane %v804, %v808
    %811 = vmatprep.subr.mxu0 0.0
    %812 = vmatpush1.msra.mxu0 %v788
    %813 = vmatprep.subr.mxu0 0.0
    %814 = vmatpush1.msra.mxu0 %v789
    %815 = vmatprep.subr.mxu0 0.0
    %816 = vmatpush1.msra.mxu0 %v790
    %817 = vmatprep.subr.mxu0 0.0
    %818 = vmatpush1.msra.mxu0 %v791
    %819 = vmatprep.subr.mxu0 0.0
    %820 = vmatpush1.msra.mxu0 %v792
    %821 = vmatprep.subr.mxu0 0.0
    %822 = vmatpush1.msra.mxu0 %v793
    %823 = vmatprep.subr.mxu0 0.0
    %824 = vmatpush1.msra.mxu0 %v794
    %825 = vmatprep.subr.mxu0 0.0
    %826 = vmatpush1.msra.mxu0 %v795
    %827 = vmatprep.subr.mxu0 0.0
    %828 = vmatpush1.msra.mxu0 %v796
    %829 = vmatprep.subr.mxu0 0.0
    %830 = vmatpush1.msra.mxu0 %v797
    %831 = vmatprep.subr.mxu0 0.0
    %832 = vmatpush1.msra.mxu0 %v798
    %833 = vmatprep.subr.mxu0 0.0
    %834 = vmatpush1.msra.mxu0 %v799
    %835 = vmatprep.subr.mxu0 0.0
    %836 = vmatpush1.msra.mxu0 %v800
    %837 = vmatprep.subr.mxu0 0.0
    %838 = vmatpush1.msra.mxu0 %v801
    %839 = vmatprep.subr.mxu0 0.0
    %840 = vmatpush1.msra.mxu0 %v802
    %841 = vmatprep.subr.mxu0 0.0
    %842 = vmatpush1.msra.mxu0 %v803
    %843 = vmatprep.subr.mxu0 0.0
    %844 = vmatpush1.msra.mxu0 0.0
    %845 = vmatprep.subr.mxu0 0.0
    %846 = vmatpush1.msra.mxu0 0.0
    %847 = vmatprep.subr.mxu0 0.0
    %848 = vmatpush1.msra.mxu0 0.0
    %849 = vmatprep.subr.mxu0 0.0
    %850 = vmatpush1.msra.mxu0 0.0
    %851 = vmatprep.subr.mxu0 0.0
    %852 = vmatpush1.msra.mxu0 0.0
    %853 = vmatprep.subr.mxu0 0.0
    %854 = vmatpush1.msra.mxu0 0.0
    %855 = vmatprep.subr.mxu0 0.0
    %856 = vmatpush1.msra.mxu0 0.0
    %857 = vmatprep.subr.mxu0 0.0
    %858 = vmatpush1.msra.mxu0 0.0
    %859 = vmatprep.subr.mxu0 0.0
    %860 = vmatpush1.msra.mxu0 0.0
    %861 = vmatprep.subr.mxu0 0.0
    %862 = vmatpush1.msra.mxu0 0.0
    %863 = vmatprep.subr.mxu0 0.0
    %864 = vmatpush1.msra.mxu0 0.0
    %865 = vmatprep.subr.mxu0 0.0
    %866 = vmatpush1.msra.mxu0 0.0
    %867 = vmatprep.subr.mxu0 0.0
    %868 = vmatpush1.msra.mxu0 0.0
    %869 = vmatprep.subr.mxu0 0.0
    %870 = vmatpush1.msra.mxu0 0.0
    %871 = vmatprep.subr.mxu0 0.0
    %872 = vmatpush1.msra.mxu0 0.0
    %873 = vmatprep.subr.mxu0 0.0
    %874 = vmatpush1.msra.mxu0 0.0
    %875 = vmatprep.mubr.f32.mxu0 0.0
    %876 = vmatmul.mubr.f32.gmra.mrb[0].mxu0 %v786
    %v877 = vpop.f32.mrb[0].mxu0
    %v878 = vadd.f32 %v809, %v877
    %v879 = vpop.f32.mrb[0].mxu0
    %880 = vmatprep.mubr.f32.mxu0 0.0
    %881 = vmatmul.mubr.f32.gmra.mrb[0].mxu0 %v787
    %v882 = vpop.f32.mrb[0].mxu0
    %v883 = vadd.f32 %v809, %v882
    %v884 = vpop.f32.mrb[0].mxu0
    %885 = vdwg.mxu0
    %v886 = vadd.f32 %v684, %v878
    %v887 = vadd.f32 %v685, %v883
    %v888 = vld [vmem:[%s11] sm:$0x1]
    %v889 = vld [vmem:[%s12] sm:$0x1]
    %v890 = vsel %vm64, %v886, 0.0
    %891 = vadd.xlane.f32.xlu0 %v890
    %v892 = vpop.xlane.xlu0 %891
    %v893 = vsel %vm64, %v887, 0.0
    %894 = vadd.xlane.f32.xlu0 %v893
    %v895 = vpop.xlane.xlu0 %894
    %v896 = vmul.f32 %v892, %v649
    %v897 = vmul.f32 %v895, %v649
    %v898 = vsub.f32 %v886, %v896
    %v899 = vsub.f32 %v887, %v897
    %v900 = vmul.f32 %v898, %v898
    %v901 = vmul.f32 %v899, %v899
    %v902 = vsel %vm64, %v900, 0.0
    %903 = vadd.xlane.f32.xlu0 %v902
    %v904 = vpop.xlane.xlu0 %903
    %v905 = vsel %vm64, %v901, 0.0
    %906 = vadd.xlane.f32.xlu0 %v905
    %v907 = vpop.xlane.xlu0 %906
    %v908 = vmul.f32 %v904, %v649
    %v909 = vmul.f32 %v907, %v649
    %v910 = vadd.f32 %v908, 1e-05
    %v911 = vadd.f32 %v909, 1e-05
    %v912 = vrsqrt.pop %v910
    %v913 = vrsqrt.pop %v911
    %v914 = vmul.f32 %v898, %v912
    %v915 = vmul.f32 %v899, %v913
    %v917 = vlaneseq
    %v918 = vshrl.u32 %v917, 7
    %v919 = vsub.s32 0, %v918
    %v920 = vrot.slane %v888, %v919
    %v922 = vmul.f32 %v914, %v920
    %v923 = vmul.f32 %v915, %v920
    %v925 = vlaneseq
    %v926 = vshrl.u32 %v925, 7
    %v927 = vsub.s32 0, %v926
    %v928 = vrot.slane %v889, %v927
    %v930 = vadd.f32 %v922, %v928
    %v931 = vadd.f32 %v923, %v928
    %932 = vst.msk [vmem:[#allocation2] sm:$0xff] %vm64, %v930
    %933 = vst.msk [vmem:[#allocation2 + $0x8] sm:$0xff] %vm64, %v931
    // Predicated region
    $region62: #{tpu_custom_call.1} parent=1 // pred_check
      _
    $region63: #{tpu_custom_call.1} parent=1 // pred_check_branch
      %935 = sbr.rel (0) target = $region65
    $region64: #{tpu_custom_call.1} parent=1 // pred_region
      %s937 = ssub.s32 256, 256
      %938 = vsyncadd [#allocation3], %s937
      %s939 = sshll.u32 [#allocation2], 4
      %s940 = int_to_ptr.vmem [resolvable:$true] %s939
      %945 = dma.vmem_to_hbm [thread:$0]  %s940, 256, %s15, [#allocation3], 128, 128, 8
    $region65: #{tpu_custom_call.1} parent=1 // pred_fallthru
      _
    // Predicated region
    $region66: #{tpu_custom_call.1} parent=1 // pred_check
      _
    $region67: #{tpu_custom_call.1} parent=1 // pred_check_branch
      %947 = sbr.rel (0) target = $region69
    $region68: #{tpu_custom_call.1} parent=1 // pred_region
      %948 = dma.done [#allocation3], 256
    $region69: #{tpu_custom_call.1} parent=1 // pred_fallthru
      _
    %949 = vsyncpa [#allocation3], 1

</llo_original>
